<compile_context>
chip_gen: v7x
topology: tpu7x:2x2x1
jax: 0.10.0
libtpu: 0.0.40
codegen_flags: <defaults>
</compile_context>

<pallas_src>
import jax
import jax.numpy as jnp
from jax.experimental import pallas as pl
from jax.experimental.pallas import tpu as pltpu


def _mlp_logsoftmax_kernel(x_ref, w1_ref, b1_ref, w2_ref, b2_ref, o_ref):
    # First linear + ReLU (MXU matmul, f32 accumulate).
    h = jnp.dot(x_ref[...], w1_ref[...], preferred_element_type=jnp.float32)
    h = jnp.maximum(h + b1_ref[...], 0.0)            # b1 is (1, hidden) -> broadcast

    # Second linear (output feature dim is lane-dense / padded to 128 in the wrapper).
    logits = jnp.dot(h, w2_ref[...], preferred_element_type=jnp.float32)
    logits = logits + b2_ref[...]                    # padded lanes carry -1e30 bias

    # Numerically-stable log_softmax along the last (lane) axis: XLU reductions + EUP exp/log.
    m = jnp.max(logits, axis=-1, keepdims=True)
    shifted = logits - m
    lse = jnp.log(jnp.sum(jnp.exp(shifted), axis=-1, keepdims=True))
    o_ref[...] = (shifted - lse).astype(o_ref.dtype)


def _round_up(x, m):
    return (x + m - 1) // m * m


def two_layer_classifier(x, w1, b1, w2, b2, *, max_block_batch=256):
    """x: (B, input_size) f32; w1: (input_size, hidden); b1: (1, hidden);
    w2: (hidden, output); b2: (1, output). Returns log-probs (B, output)."""
    B, in_dim = x.shape
    hidden = w1.shape[1]
    out_dim = w2.shape[1]

    # Lane-dense output: pad output feature dim to a multiple of 128.
    out_pad = _round_up(out_dim, 128)
    # One grid step for small batches; 256-row tiles (good MXU M-fill) for large ones.
    block_batch = min(_round_up(B, 8), max_block_batch)
    B_pad = _round_up(B, block_batch)

    if B_pad != B:
        x = jnp.pad(x, ((0, B_pad - B), (0, 0)))
    if out_pad != out_dim:
        w2 = jnp.pad(w2, ((0, 0), (0, out_pad - out_dim)))
        # Huge negative bias on padded lanes -> exp underflows to 0 in the softmax sum.
        b2 = jnp.pad(b2, ((0, 0), (0, out_pad - out_dim)), constant_values=-1e30)

    grid = (B_pad // block_batch,)

    flops = 2 * B_pad * (in_dim * hidden + hidden * out_pad)
    bytes_accessed = 4 * (B_pad * in_dim + in_dim * hidden + hidden
                          + hidden * out_pad + out_pad + B_pad * out_pad)
    cost = pl.CostEstimate(flops=flops,
                           transcendentals=B_pad * out_pad,
                           bytes_accessed=bytes_accessed)

    out = pl.pallas_call(
        _mlp_logsoftmax_kernel,
        out_shape=jax.ShapeDtypeStruct((B_pad, out_pad), jnp.float32),
        grid_spec=pltpu.PrefetchScalarGridSpec(
            num_scalar_prefetch=0,
            grid=grid,
            in_specs=[
                pl.BlockSpec((block_batch, in_dim), lambda i: (i, 0)),   # x tile over batch
                pl.BlockSpec((in_dim, hidden), lambda i: (0, 0)),        # w1 (full, resident)
                pl.BlockSpec((1, hidden), lambda i: (0, 0)),             # b1
                pl.BlockSpec((hidden, out_pad), lambda i: (0, 0)),       # w2 (lane-padded)
                pl.BlockSpec((1, out_pad), lambda i: (0, 0)),            # b2 (lane-padded)
            ],
            out_specs=pl.BlockSpec((block_batch, out_pad), lambda i: (i, 0)),
        ),
        compiler_params=pltpu.CompilerParams(
            dimension_semantics=("parallel",),
        ),
        cost_estimate=cost,
    )(x, w1, b1, w2, b2)

    # Strip batch / lane padding outside the kernel.
    return out[:B, :out_dim]


if __name__ == "__main__":
    # Small shapes consistent with the module: input_size=32, hidden_size=64, output_size=16.
    batch, input_size, hidden_size, output_size = 16, 32, 64, 16

    key = jax.random.PRNGKey(0)
    kx, kw1, kb1, kw2, kb2 = jax.random.split(key, 5)

    # Deterministic synthetic parameter init (PyTorch nn.Linear-style uniform bounds).
    bound1 = 1.0 / (input_size ** 0.5)
    bound2 = 1.0 / (hidden_size ** 0.5)
    w1 = jax.random.uniform(kw1, (input_size, hidden_size), jnp.float32, -bound1, bound1)
    b1 = jax.random.uniform(kb1, (1, hidden_size), jnp.float32, -bound1, bound1)
    w2 = jax.random.uniform(kw2, (hidden_size, output_size), jnp.float32, -bound2, bound2)
    b2 = jax.random.uniform(kb2, (1, output_size), jnp.float32, -bound2, bound2)

    x = jax.random.normal(kx, (batch, input_size), jnp.float32)

    out = two_layer_classifier(x, w1, b1, w2, b2)
    out = jax.block_until_ready(out)

    # Reference check in plain JAX (same math).
    ref_logits = jnp.maximum(x @ w1 + b1, 0.0) @ w2 + b2
    ref = jax.nn.log_softmax(ref_logits, axis=-1)
    assert out.shape == (batch, output_size)
    assert jnp.allclose(out, ref, atol=1e-5, rtol=1e-5), "mismatch vs reference"

    print("KERNEL_OK")
</pallas_src>

<mosaic_0001>
module attributes {stable_mosaic.version = 11 : i64} {
  func.func @_mlp_logsoftmax_kernel(%arg0: i32, %arg1: memref<16x32xf32, #tpu.memory_space<vmem>>, %arg2: memref<32x64xf32, #tpu.memory_space<vmem>>, %arg3: memref<1x64xf32, #tpu.memory_space<vmem>>, %arg4: memref<64x128xf32, #tpu.memory_space<vmem>>, %arg5: memref<1x128xf32, #tpu.memory_space<vmem>>, %arg6: memref<16x128xf32, #tpu.memory_space<vmem>>) attributes {dimension_semantics = [#tpu.dimension_semantics<parallel>], iteration_bounds = array<i64: 1>, scalar_prefetch = 0 : i64, scratch_operands = 0 : i64, tpu.core_type = #tpu.core_type<tc>, window_params = [{transform_indices = @transform_0, window_bounds = array<i64: 16, 32>}, {pipeline_mode = #tpu.pipeline_mode<synchronous>, transform_indices = @transform_1, window_bounds = array<i64: 32, 64>}, {pipeline_mode = #tpu.pipeline_mode<synchronous>, transform_indices = @transform_2, window_bounds = array<i64: 1, 64>}, {pipeline_mode = #tpu.pipeline_mode<synchronous>, transform_indices = @transform_3, window_bounds = array<i64: 64, 128>}, {pipeline_mode = #tpu.pipeline_mode<synchronous>, transform_indices = @transform_4, window_bounds = array<i64: 1, 128>}, {transform_indices = @transform_5, window_bounds = array<i64: 16, 128>}]} {
    %c0 = arith.constant 0 : index
    %c0_0 = arith.constant 0 : index
    %0 = vector.load %arg1[%c0, %c0_0] : memref<16x32xf32, #tpu.memory_space<vmem>>, vector<16x32xf32>
    %c0_1 = arith.constant 0 : index
    %c0_2 = arith.constant 0 : index
    %1 = vector.load %arg2[%c0_1, %c0_2] : memref<32x64xf32, #tpu.memory_space<vmem>>, vector<32x64xf32>
    %cst = arith.constant dense<0.000000e+00> : vector<16x64xf32>
    %2 = tpu.matmul %0, %1, %cst {dimension_numbers = #tpu.dot_dimension_numbers<[1], [0], [0], [1], [0, 0, 1, 1], [], []>} : vector<16x32xf32>, vector<32x64xf32>, vector<16x64xf32> -> vector<16x64xf32>
    %c0_3 = arith.constant 0 : index
    %c0_4 = arith.constant 0 : index
    %3 = vector.load %arg3[%c0_3, %c0_4] : memref<1x64xf32, #tpu.memory_space<vmem>>, vector<1x64xf32>
    %4 = vector.broadcast %3 : vector<1x64xf32> to vector<16x64xf32>
    %5 = arith.addf %2, %4 : vector<16x64xf32>
    %cst_5 = arith.constant 0.000000e+00 : f32
    %6 = vector.broadcast %cst_5 : f32 to vector<16x64xf32>
    %7 = arith.maximumf %5, %6 : vector<16x64xf32>
    %c0_6 = arith.constant 0 : index
    %c0_7 = arith.constant 0 : index
    %8 = vector.load %arg4[%c0_6, %c0_7] : memref<64x128xf32, #tpu.memory_space<vmem>>, vector<64x128xf32>
    %cst_8 = arith.constant dense<0.000000e+00> : vector<16x128xf32>
    %9 = tpu.matmul %7, %8, %cst_8 {dimension_numbers = #tpu.dot_dimension_numbers<[1], [0], [0], [1], [0, 0, 1, 1], [], []>} : vector<16x64xf32>, vector<64x128xf32>, vector<16x128xf32> -> vector<16x128xf32>
    %c0_9 = arith.constant 0 : index
    %c0_10 = arith.constant 0 : index
    %10 = vector.load %arg5[%c0_9, %c0_10] : memref<1x128xf32, #tpu.memory_space<vmem>>, vector<1x128xf32>
    %11 = vector.broadcast %10 : vector<1x128xf32> to vector<16x128xf32>
    %12 = arith.addf %9, %11 : vector<16x128xf32>
    %cst_11 = arith.constant dense<0xFF800000> : vector<16xf32>
    %13 = vector.multi_reduction <maximumf>, %12, %cst_11 [1] : vector<16x128xf32> to vector<16xf32>
    %14 = vector.shape_cast %13 : vector<16xf32> to vector<16x1xf32>
    %15 = vector.broadcast %14 : vector<16x1xf32> to vector<16x128xf32>
    %16 = arith.subf %12, %15 : vector<16x128xf32>
    %17 = math.exp %16 : vector<16x128xf32>
    %cst_12 = arith.constant dense<0.000000e+00> : vector<16xf32>
    %18 = vector.multi_reduction <add>, %17, %cst_12 [1] : vector<16x128xf32> to vector<16xf32>
    %19 = vector.shape_cast %18 : vector<16xf32> to vector<16x1xf32>
    %20 = math.log %19 : vector<16x1xf32>
    %21 = vector.broadcast %20 : vector<16x1xf32> to vector<16x128xf32>
    %22 = arith.subf %16, %21 : vector<16x128xf32>
    %c0_13 = arith.constant 0 : index
    %c0_14 = arith.constant 0 : index
    %23 = vector.load %arg6[%c0_13, %c0_14] : memref<16x128xf32, #tpu.memory_space<vmem>>, vector<16x128xf32>
    tpu.vector_store %arg6[%c0_13, %c0_14], %22 {strides = array<i32>} : memref<16x128xf32, #tpu.memory_space<vmem>>, vector<16x128xf32>,
    return
  }
  func.func @transform_0(%arg0: i32) -> (i32, i32) {
    %c0_i32 = arith.constant 0 : i32
    %c0_i32_0 = arith.constant 0 : i32
    return %arg0, %c0_i32 : i32, i32
  }
  func.func @transform_1(%arg0: i32) -> (i32, i32) {
    %c0_i32 = arith.constant 0 : i32
    %c0_i32_0 = arith.constant 0 : i32
    %c0_i32_1 = arith.constant 0 : i32
    return %c0_i32, %c0_i32_0 : i32, i32
  }
  func.func @transform_2(%arg0: i32) -> (i32, i32) {
    %c0_i32 = arith.constant 0 : i32
    %c0_i32_0 = arith.constant 0 : i32
    %c0_i32_1 = arith.constant 0 : i32
    return %c0_i32, %c0_i32_0 : i32, i32
  }
  func.func @transform_3(%arg0: i32) -> (i32, i32) {
    %c0_i32 = arith.constant 0 : i32
    %c0_i32_0 = arith.constant 0 : i32
    %c0_i32_1 = arith.constant 0 : i32
    return %c0_i32, %c0_i32_0 : i32, i32
  }
  func.func @transform_4(%arg0: i32) -> (i32, i32) {
    %c0_i32 = arith.constant 0 : i32
    %c0_i32_0 = arith.constant 0 : i32
    %c0_i32_1 = arith.constant 0 : i32
    return %c0_i32, %c0_i32_0 : i32, i32
  }
  func.func @transform_5(%arg0: i32) -> (i32, i32) {
    %c0_i32 = arith.constant 0 : i32
    %c0_i32_0 = arith.constant 0 : i32
    return %arg0, %c0_i32 : i32, i32
  }
}

</mosaic_0001>

<llo_original>
// kernel: tpu_custom_call.1
$region0: #{tpu_custom_call.1}
  #allocation0 [shape = 'u32[]', space=smem, size = 0x4, offset = 0x4, fixed_abs, tag = 'smem constant byte address 0x4 - core index']
  #allocation1 [shape = 'u32[144,128]{1,0:T(1,128)}', space=vmem, size = 0x12000, scoped, tag = 'internal scratch']
  %s0 = inlined_call_operand.hbm [shape: f32[16,32], index: 0, kind: input, shape index: {}]
  %s1 = inlined_call_operand.hbm [shape: f32[32,64], index: 1, kind: input, shape index: {}]
  %s2 = inlined_call_operand.vmem [shape: f32[1,64], index: 2, kind: input, shape index: {}]
  %s3 = inlined_call_operand.hbm [shape: f32[64,128], index: 3, kind: input, shape index: {}]
  %s4 = inlined_call_operand.vmem [shape: f32[1,128], index: 4, kind: input, shape index: {}]
  %s5 = inlined_call_operand.hbm [shape: f32[16,128], index: 5, kind: output, shape index: {}]
  %s6 = sld [smem:[#allocation0]]
  $region42: #{tpu_custom_call.1} parent=0
    _
  %s8 = ssub.s32 1, %s6
  %s9 = scalar_select 0, %s8, %s6
  $region1: #{tpu_custom_call.1} parent=0
    #allocation2 [shape = 'u8[8192]{0}', space=vmem, size = 0x2000, scoped, tag = 'input window, operand 0, single buffered']
    #allocation3 [shape = 's32[1]{0}', space=sflag, size = 0x4, scoped, tag = 'scoped memory for tpu_custom_call.1']
    #allocation4 [shape = 's32[1]{0}', space=sflag, size = 0x4, scoped, tag = 'scoped memory for tpu_custom_call.1']
    #allocation5 [shape = 'u8[16384]{0}', space=vmem, size = 0x4000, scoped, tag = 'input window, operand 1, single buffered']
    #allocation6 [shape = 's32[1]{0}', space=sflag, size = 0x4, scoped, tag = 'scoped memory for tpu_custom_call.1']
    #allocation7 [shape = 'u8[32768]{0}', space=vmem, size = 0x8000, scoped, tag = 'input window, operand 3, single buffered']
    #allocation8 [shape = 'u8[8192]{0}', space=vmem, size = 0x2000, scoped, tag = 'output window, operand 0, single buffered']
    %10 = vsyncpa [#allocation3], 0
    %11 = vsyncpa [#allocation6], 0
    %12 = vsyncpa [#allocation4], 0
    // Predicated region
    $region2: #{tpu_custom_call.1} parent=1 // pred_check
      _
    $region3: #{tpu_custom_call.1} parent=1 // pred_check_branch
      %14 = sbr.rel (0) target = $region5
    $region4: #{tpu_custom_call.1} parent=1 // pred_region
      %s16 = ssub.s32 256, 256
      %17 = vsyncadd [#allocation3], %s16
      %s18 = sshll.u32 [#allocation2], 4
      %s19 = int_to_ptr.vmem [resolvable:$true] %s18
      %24 = dma.hbm_to_vmem [thread:$0]  %s0, 256, %s19, [#allocation3], 128, 128, 8
    $region5: #{tpu_custom_call.1} parent=1 // pred_fallthru
      _
    // Predicated region
    $region6: #{tpu_custom_call.1} parent=1 // pred_check
      _
    $region7: #{tpu_custom_call.1} parent=1 // pred_check_branch
      %26 = sbr.rel (0) target = $region9
    $region8: #{tpu_custom_call.1} parent=1 // pred_region
      %s28 = ssub.s32 512, 512
      %29 = vsyncadd [#allocation6], %s28
      %s30 = sshll.u32 [#allocation5], 4
      %s31 = int_to_ptr.vmem [resolvable:$true] %s30
      %36 = dma.hbm_to_vmem [thread:$0]  %s1, 512, %s31, [#allocation6], 128, 128, 8
    $region9: #{tpu_custom_call.1} parent=1 // pred_fallthru
      _
    // Predicated region
    $region10: #{tpu_custom_call.1} parent=1 // pred_check
      _
    $region11: #{tpu_custom_call.1} parent=1 // pred_check_branch
      %38 = sbr.rel (0) target = $region13
    $region12: #{tpu_custom_call.1} parent=1 // pred_region
      _
    $region13: #{tpu_custom_call.1} parent=1 // pred_fallthru
      _
    // Predicated region
    $region14: #{tpu_custom_call.1} parent=1 // pred_check
      _
    $region15: #{tpu_custom_call.1} parent=1 // pred_check_branch
      %40 = sbr.rel (0) target = $region17
    $region16: #{tpu_custom_call.1} parent=1 // pred_region
      %s42 = ssub.s32 1024, 1024
      %43 = vsyncadd [#allocation6], %s42
      %s44 = sshll.u32 [#allocation7], 4
      %s45 = int_to_ptr.vmem [resolvable:$true] %s44
      %50 = dma.hbm_to_vmem [thread:$0]  %s3, 1024, %s45, [#allocation6], 128, 128, 8
    $region17: #{tpu_custom_call.1} parent=1 // pred_fallthru
      _
    // Predicated region
    $region18: #{tpu_custom_call.1} parent=1 // pred_check
      _
    $region19: #{tpu_custom_call.1} parent=1 // pred_check_branch
      %52 = sbr.rel (0) target = $region21
    $region20: #{tpu_custom_call.1} parent=1 // pred_region
      _
    $region21: #{tpu_custom_call.1} parent=1 // pred_fallthru
      _
    // Predicated region
    $region22: #{tpu_custom_call.1} parent=1 // pred_check
      _
    $region23: #{tpu_custom_call.1} parent=1 // pred_check_branch
      %54 = sbr.rel (0) target = $region25
    $region24: #{tpu_custom_call.1} parent=1 // pred_region
      %55 = dma.done [#allocation3], 256
    $region25: #{tpu_custom_call.1} parent=1 // pred_fallthru
      _
    // Predicated region
    $region26: #{tpu_custom_call.1} parent=1 // pred_check
      _
    $region27: #{tpu_custom_call.1} parent=1 // pred_check_branch
      %57 = sbr.rel (0) target = $region29
    $region28: #{tpu_custom_call.1} parent=1 // pred_region
      %58 = dma.done [#allocation6], 512
    $region29: #{tpu_custom_call.1} parent=1 // pred_fallthru
      _
    // Predicated region
    $region30: #{tpu_custom_call.1} parent=1 // pred_check
      _
    $region31: #{tpu_custom_call.1} parent=1 // pred_check_branch
      %60 = sbr.rel (0) target = $region33
    $region32: #{tpu_custom_call.1} parent=1 // pred_region
      %61 = dma.done [#allocation6], 1024
    $region33: #{tpu_custom_call.1} parent=1 // pred_fallthru
      _
    %v62 = vld [vmem:[#allocation2] sm:$0xff]
    %v63 = vld [vmem:[#allocation2 + $0x8] sm:$0xff]
    %v64 = vld [vmem:[#allocation5] sm:$0xff]
    %v65 = vld [vmem:[#allocation5 + $0x8] sm:$0xff]
    %v66 = vld [vmem:[#allocation5 + $0x10] sm:$0xff]
    %v67 = vld [vmem:[#allocation5 + $0x18] sm:$0xff]
    %v68 = vld [vmem:[%s2] sm:$0x1]
    %v70 = vlaneseq
    %v71 = vshrl.u32 %v70, 7
    %v72 = vsub.s32 0, %v71
    %v73 = vrot.slane %v68, %v72
    %vm75 = vcmask 261120
    %v77 = vsel %vm75, %v62, 0
    %v80 = vsel %vm75, %v63, 0
    %82 = vmatprep.subr.mxu0 0.0
    %83 = vmatpush1.msra.mxu0 %v64
    %84 = vmatprep.subr.mxu0 0.0
    %85 = vmatpush1.msra.mxu0 %v65
    %86 = vmatprep.subr.mxu0 0.0
    %87 = vmatpush1.msra.mxu0 %v66
    %88 = vmatprep.subr.mxu0 0.0
    %89 = vmatpush1.msra.mxu0 %v67
    %90 = vmatprep.subr.mxu0 0.0
    %91 = vmatpush1.msra.mxu0 0.0
    %92 = vmatprep.subr.mxu0 0.0
    %93 = vmatpush1.msra.mxu0 0.0
    %94 = vmatprep.subr.mxu0 0.0
    %95 = vmatpush1.msra.mxu0 0.0
    %96 = vmatprep.subr.mxu0 0.0
    %97 = vmatpush1.msra.mxu0 0.0
    %98 = vmatprep.subr.mxu0 0.0
    %99 = vmatpush1.msra.mxu0 0.0
    %100 = vmatprep.subr.mxu0 0.0
    %101 = vmatpush1.msra.mxu0 0.0
    %102 = vmatprep.subr.mxu0 0.0
    %103 = vmatpush1.msra.mxu0 0.0
    %104 = vmatprep.subr.mxu0 0.0
    %105 = vmatpush1.msra.mxu0 0.0
    %106 = vmatprep.subr.mxu0 0.0
    %107 = vmatpush1.msra.mxu0 0.0
    %108 = vmatprep.subr.mxu0 0.0
    %109 = vmatpush1.msra.mxu0 0.0
    %110 = vmatprep.subr.mxu0 0.0
    %111 = vmatpush1.msra.mxu0 0.0
    %112 = vmatprep.subr.mxu0 0.0
    %113 = vmatpush1.msra.mxu0 0.0
    %114 = vmatprep.subr.mxu0 0.0
    %115 = vmatpush1.msra.mxu0 0.0
    %116 = vmatprep.subr.mxu0 0.0
    %117 = vmatpush1.msra.mxu0 0.0
    %118 = vmatprep.subr.mxu0 0.0
    %119 = vmatpush1.msra.mxu0 0.0
    %120 = vmatprep.subr.mxu0 0.0
    %121 = vmatpush1.msra.mxu0 0.0
    %122 = vmatprep.subr.mxu0 0.0
    %123 = vmatpush1.msra.mxu0 0.0
    %124 = vmatprep.subr.mxu0 0.0
    %125 = vmatpush1.msra.mxu0 0.0
    %126 = vmatprep.subr.mxu0 0.0
    %127 = vmatpush1.msra.mxu0 0.0
    %128 = vmatprep.subr.mxu0 0.0
    %129 = vmatpush1.msra.mxu0 0.0
    %130 = vmatprep.subr.mxu0 0.0
    %131 = vmatpush1.msra.mxu0 0.0
    %132 = vmatprep.subr.mxu0 0.0
    %133 = vmatpush1.msra.mxu0 0.0
    %134 = vmatprep.subr.mxu0 0.0
    %135 = vmatpush1.msra.mxu0 0.0
    %136 = vmatprep.subr.mxu0 0.0
    %137 = vmatpush1.msra.mxu0 0.0
    %138 = vmatprep.subr.mxu0 0.0
    %139 = vmatpush1.msra.mxu0 0.0
    %140 = vmatprep.subr.mxu0 0.0
    %141 = vmatpush1.msra.mxu0 0.0
    %142 = vmatprep.subr.mxu0 0.0
    %143 = vmatpush1.msra.mxu0 0.0
    %144 = vmatprep.subr.mxu0 0.0
    %145 = vmatpush1.msra.mxu0 0.0
    %146 = vmatprep.mubr.f32.mxu0 0.0
    %147 = vmatmul.mubr.f32.gmra.mrb[0].mxu0 %v77
    %v148 = vpop.f32.mrb[0].mxu0
    %v149 = vadd.f32 %v73, %v148
    %v150 = vpop.f32.mrb[0].mxu0
    %151 = vmatprep.mubr.f32.mxu0 0.0
    %152 = vmatmul.mubr.f32.gmra.mrb[0].mxu0 %v80
    %v153 = vpop.f32.mrb[0].mxu0
    %v154 = vadd.f32 %v73, %v153
    %v155 = vpop.f32.mrb[0].mxu0
    %156 = vdwg.mxu0
    %v157 = vmax.f32 %v149, 0.0
    %v158 = vmax.f32 %v154, 0.0
    %v159 = vld [vmem:[#allocation7] sm:$0xff]
    %v160 = vld [vmem:[#allocation7 + $0x8] sm:$0xff]
    %v161 = vld [vmem:[#allocation7 + $0x10] sm:$0xff]
    %v162 = vld [vmem:[#allocation7 + $0x18] sm:$0xff]
    %v163 = vld [vmem:[#allocation7 + $0x20] sm:$0xff]
    %v164 = vld [vmem:[#allocation7 + $0x28] sm:$0xff]
    %v165 = vld [vmem:[#allocation7 + $0x30] sm:$0xff]
    %v166 = vld [vmem:[#allocation7 + $0x38] sm:$0xff]
    %v167 = vld [vmem:[%s4] sm:$0x1]
    %v169 = vlaneseq
    %v170 = vshrl.u32 %v169, 7
    %v171 = vsub.s32 0, %v170
    %v172 = vrot.slane %v167, %v171
    %vm174 = vcmask 523264
    %v176 = vsel %vm174, %v157, 0
    %v179 = vsel %vm174, %v158, 0
    %181 = vmatprep.subr.mxu0 0.0
    %182 = vmatpush1.msra.mxu0 %v159
    %183 = vmatprep.subr.mxu0 0.0
    %184 = vmatpush1.msra.mxu0 %v160
    %185 = vmatprep.subr.mxu0 0.0
    %186 = vmatpush1.msra.mxu0 %v161
    %187 = vmatprep.subr.mxu0 0.0
    %188 = vmatpush1.msra.mxu0 %v162
    %189 = vmatprep.subr.mxu0 0.0
    %190 = vmatpush1.msra.mxu0 %v163
    %191 = vmatprep.subr.mxu0 0.0
    %192 = vmatpush1.msra.mxu0 %v164
    %193 = vmatprep.subr.mxu0 0.0
    %194 = vmatpush1.msra.mxu0 %v165
    %195 = vmatprep.subr.mxu0 0.0
    %196 = vmatpush1.msra.mxu0 %v166
    %197 = vmatprep.subr.mxu0 0.0
    %198 = vmatpush1.msra.mxu0 0.0
    %199 = vmatprep.subr.mxu0 0.0
    %200 = vmatpush1.msra.mxu0 0.0
    %201 = vmatprep.subr.mxu0 0.0
    %202 = vmatpush1.msra.mxu0 0.0
    %203 = vmatprep.subr.mxu0 0.0
    %204 = vmatpush1.msra.mxu0 0.0
    %205 = vmatprep.subr.mxu0 0.0
    %206 = vmatpush1.msra.mxu0 0.0
    %207 = vmatprep.subr.mxu0 0.0
    %208 = vmatpush1.msra.mxu0 0.0
    %209 = vmatprep.subr.mxu0 0.0
    %210 = vmatpush1.msra.mxu0 0.0
    %211 = vmatprep.subr.mxu0 0.0
    %212 = vmatpush1.msra.mxu0 0.0
    %213 = vmatprep.subr.mxu0 0.0
    %214 = vmatpush1.msra.mxu0 0.0
    %215 = vmatprep.subr.mxu0 0.0
    %216 = vmatpush1.msra.mxu0 0.0
    %217 = vmatprep.subr.mxu0 0.0
    %218 = vmatpush1.msra.mxu0 0.0
    %219 = vmatprep.subr.mxu0 0.0
    %220 = vmatpush1.msra.mxu0 0.0
    %221 = vmatprep.subr.mxu0 0.0
    %222 = vmatpush1.msra.mxu0 0.0
    %223 = vmatprep.subr.mxu0 0.0
    %224 = vmatpush1.msra.mxu0 0.0
    %225 = vmatprep.subr.mxu0 0.0
    %226 = vmatpush1.msra.mxu0 0.0
    %227 = vmatprep.subr.mxu0 0.0
    %228 = vmatpush1.msra.mxu0 0.0
    %229 = vmatprep.subr.mxu0 0.0
    %230 = vmatpush1.msra.mxu0 0.0
    %231 = vmatprep.subr.mxu0 0.0
    %232 = vmatpush1.msra.mxu0 0.0
    %233 = vmatprep.subr.mxu0 0.0
    %234 = vmatpush1.msra.mxu0 0.0
    %235 = vmatprep.subr.mxu0 0.0
    %236 = vmatpush1.msra.mxu0 0.0
    %237 = vmatprep.subr.mxu0 0.0
    %238 = vmatpush1.msra.mxu0 0.0
    %239 = vmatprep.subr.mxu0 0.0
    %240 = vmatpush1.msra.mxu0 0.0
    %241 = vmatprep.subr.mxu0 0.0
    %242 = vmatpush1.msra.mxu0 0.0
    %243 = vmatprep.subr.mxu0 0.0
    %244 = vmatpush1.msra.mxu0 0.0
    %245 = vmatprep.mubr.f32.mxu0 0.0
    %246 = vmatmul.mubr.f32.gmra.mrb[0].mxu0 %v176
    %v247 = vpop.f32.mrb[0].mxu0
    %v248 = vadd.f32 %v172, %v247
    %v249 = vpop.f32.mrb[0].mxu0
    %250 = vmatprep.mubr.f32.mxu0 0.0
    %251 = vmatmul.mubr.f32.gmra.mrb[0].mxu0 %v179
    %v252 = vpop.f32.mrb[0].mxu0
    %v253 = vadd.f32 %v172, %v252
    %v254 = vpop.f32.mrb[0].mxu0
    %255 = vdwg.mxu0
    %256 = vmax.xlane.f32.xlu0 %v248
    %v257 = vpop.xlane.xlu0 %256
    %258 = vmax.xlane.f32.xlu0 %v253
    %v259 = vpop.xlane.xlu0 %258
    %v260 = vsub.f32 %v248, %v257
    %v261 = vsub.f32 %v253, %v259
    %v262 = vmul.f32 %v260, 1.442695
    %v263 = vpow.pop %v262
    %v264 = vmul.f32 %v261, 1.442695
    %v265 = vpow.pop %v264
    %266 = vadd.xlane.f32.xlu0 %v263
    %v267 = vpop.xlane.xlu0 %266
    %268 = vadd.xlane.f32.xlu0 %v265
    %v269 = vpop.xlane.xlu0 %268
    %v270 = vlog2.pop %v267
    %v271 = vmul.f32 %v270, 0.6931472
    %v272 = vlog2.pop %v269
    %v273 = vmul.f32 %v272, 0.6931472
    %v274 = vsub.f32 %v260, %v271
    %v275 = vsub.f32 %v261, %v273
    %276 = vst [vmem:[#allocation8] sm:$0xff] %v274
    %277 = vst [vmem:[#allocation8 + $0x8] sm:$0xff] %v275
    // Predicated region
    $region34: #{tpu_custom_call.1} parent=1 // pred_check
      _
    $region35: #{tpu_custom_call.1} parent=1 // pred_check_branch
      %279 = sbr.rel (0) target = $region37
    $region36: #{tpu_custom_call.1} parent=1 // pred_region
      %s281 = ssub.s32 256, 256
      %282 = vsyncadd [#allocation4], %s281
      %s283 = sshll.u32 [#allocation8], 4
      %s284 = int_to_ptr.vmem [resolvable:$true] %s283
      %289 = dma.vmem_to_hbm [thread:$0]  %s284, 256, %s5, [#allocation4], 128, 128, 8
    $region37: #{tpu_custom_call.1} parent=1 // pred_fallthru
      _
    // Predicated region
    $region38: #{tpu_custom_call.1} parent=1 // pred_check
      _
    $region39: #{tpu_custom_call.1} parent=1 // pred_check_branch
      %291 = sbr.rel (0) target = $region41
    $region40: #{tpu_custom_call.1} parent=1 // pred_region
      %292 = dma.done [#allocation4], 256
    $region41: #{tpu_custom_call.1} parent=1 // pred_fallthru
      _
    %293 = vsyncpa [#allocation3], 1
    %294 = vsyncpa [#allocation6], 1
    %295 = vsyncpa [#allocation4], 1

</llo_original>
